<compile_context>
chip_gen: v7x
topology: tpu7x:2x2x1
jax: 0.10.0
libtpu: 0.0.40
codegen_flags: <defaults>
</compile_context>

<pallas_src>
import math
import functools

import jax
import jax.numpy as jnp
from jax import lax
from jax.experimental import pallas as pl
from jax.experimental.pallas import tpu as pltpu


# ----------------------------------------------------------------------------
# Linear projection kernel:  y = x @ W_t + b
# W_t is pre-transposed to (E_in, E_out) and pre-cast to the compute dtype in
# the wrapper, so the kernel is a plain (M,K)x(K,N) contraction.
# ----------------------------------------------------------------------------
def linear_kernel(x_ref, w_ref, b_ref, o_ref):
    x = x_ref[...].astype(w_ref.dtype)
    y = jnp.dot(x, w_ref[...], preferred_element_type=jnp.float32)
    o_ref[...] = (y + b_ref[...]).astype(o_ref.dtype)


def linear(x2d, w_t, b, *, out_dtype=jnp.float32, tm_max=512):
    """x2d: (M, E_in); w_t: (E_in, E_out) in compute dtype; b: (E_out,) f32."""
    M, e_in = x2d.shape
    e_out = w_t.shape[1]
    tm = M if M <= tm_max else tm_max
    return pl.pallas_call(
        linear_kernel,
        grid=(pl.cdiv(M, tm),),
        in_specs=[
            pl.BlockSpec((tm, e_in), lambda i: (i, 0)),
            pl.BlockSpec((e_in, e_out), lambda i: (0, 0)),
            pl.BlockSpec((1, e_out), lambda i: (0, 0)),
        ],
        out_specs=pl.BlockSpec((tm, e_out), lambda i: (i, 0)),
        out_shape=jax.ShapeDtypeStruct((M, e_out), out_dtype),
        compiler_params=pltpu.CompilerParams(dimension_semantics=("parallel",)),
    )(x2d, w_t, b.reshape(1, e_out))


# ----------------------------------------------------------------------------
# Lane-axis inclusive prefix sum (Hillis-Steele): O(S log S) VPU/XLU work.
# Replaces the O(S^3) matmul against a strictly-upper-triangular (S,S) matrix.
# ----------------------------------------------------------------------------
def _inclusive_prefix_sum_lanes(x):
    n = x.shape[-1]
    k = 1
    while k < n:
        zeros = jnp.zeros(x.shape[:-1] + (k,), x.dtype)
        shifted = jnp.concatenate([zeros, x[..., : n - k]], axis=-1)
        x = x + shifted
        k *= 2
    return x


# ----------------------------------------------------------------------------
# Fused attention kernel: one (batch, query-tile) block per grid step,
# heads looped inside the kernel on the lane-dense (tq, E) block.
# ----------------------------------------------------------------------------
def attn_kernel(g_ref, q_ref, k_ref, v_ref, m_ref, o_ref, *score_refs,
                n_heads, maxout, compute_dtype, return_scores):
    tq, E = q_ref.shape
    S = k_ref.shape[0]
    D = E // n_heads
    scale = 1.0 / math.sqrt(D)
    neg_inf = jnp.float32(-1e32)
    approx = compute_dtype != jnp.float32
    q_base = pl.program_id(1) * tq

    q_all = q_ref[...].astype(compute_dtype)        # (tq, E) already compute dtype
    k_all = k_ref[...].astype(compute_dtype)        # (S,  E)
    v_all = v_ref[...].astype(compute_dtype)        # (S,  E)
    mask = m_ref[...] != 0                          # (tq, S) bool (int8 input)

    # |x1 - x2| with *global* query indices (query axis is tiled).
    rows = q_base + lax.broadcasted_iota(jnp.int32, (tq, S), 0)
    cols = lax.broadcasted_iota(jnp.int32, (tq, S), 1)
    position_effect = jnp.abs(cols - rows).astype(jnp.float32)

    for h in range(n_heads):
        q_h = q_all[:, h * D:(h + 1) * D]           # (tq, D)
        k_h = k_all[:, h * D:(h + 1) * D]           # (S,  D)
        v_h = v_all[:, h * D:(h + 1) * D]           # (S,  D)

        scores = lax.dot_general(q_h, k_h, (((1,), (1,)), ((), ())),
                                 preferred_element_type=jnp.float32) * scale

        # ---- distance-decay term (the torch.no_grad block) ------------------
        masked1 = jnp.where(mask, scores, neg_inf)
        m1 = jnp.max(masked1, axis=-1, keepdims=True)
        e1 = jnp.exp(masked1 - m1)                                  # f32
        s1 = jnp.sum(e1, axis=-1, keepdims=True)
        inv1 = pl.reciprocal(s1, approx=False)      # exact: feeds sqrt/exp below
        # (disttotal - distcum)[i, j] = sum_{a > j} softmax(scores)[i, a]
        remaining = (s1 - _inclusive_prefix_sum_lanes(e1)) * inv1
        dist_scores = jnp.sqrt(jnp.maximum(remaining * position_effect, 0.0))
        gamma = -jnp.abs(g_ref[h])                  # scalar read from SMEM
        total_effect = jnp.clip(jnp.exp(dist_scores * gamma), 1e-5, 1e5)
        scores = scores * total_effect

        # ---- masked softmax --------------------------------------------------
        masked2 = jnp.where(mask, scores, neg_inf)
        m2 = jnp.max(masked2, axis=-1, keepdims=True)
        e2 = jnp.exp(masked2 - m2)
        inv2 = pl.reciprocal(jnp.sum(e2, axis=-1, keepdims=True), approx=approx)
        attn = jnp.where(mask, e2 * inv2, 0.0)

        if maxout:
            mx = jnp.minimum(1.0 / (jnp.max(attn, axis=-1, keepdims=True) + 1e-8), 5.0)
            attn = attn * mx

        head_out = jnp.dot(attn.astype(compute_dtype), v_h,
                           preferred_element_type=jnp.float32)
        # Store straight into the lane-dense output block: bounds live ranges
        # (no Python list of head outputs + concatenate at the end).
        o_ref[:, h * D:(h + 1) * D] = head_out.astype(o_ref.dtype)
        if return_scores:
            score_refs[0][h] = attn.astype(score_refs[0].dtype)


def _pick_q_tile(S, tq_max=256):
    # tq=256 fills the v6e/v7x MXU M dim; use tq_max=128 on v5e or when VMEM
    # is tight (v7x has only 64 MiB of VMEM).
    for cand in (tq_max, 128, 64, 32, 16, 8):
        if cand <= S and S % cand == 0:
            return cand
    return S


def mha_attention(q, k, v, mask2d, gammas, *, n_heads, maxout=False,
                  compute_dtype=jnp.bfloat16, return_scores=True,
                  out_dtype=None, scores_dtype=None, tq_max=256):
    """q/k/v: (B, S, E) lane-dense; mask2d: (S, S) int8; gammas: (H,) f32."""
    B, S, E = q.shape
    H = n_heads
    out_dtype = compute_dtype if out_dtype is None else out_dtype
    scores_dtype = compute_dtype if scores_dtype is None else scores_dtype
    tq = _pick_q_tile(S, tq_max)
    grid = (B, S // tq)          # batch outermost so each v7x core keeps its own K/V

    qo_spec = pl.BlockSpec((None, tq, E), lambda b, qi: (b, qi, 0))
    kv_spec = pl.BlockSpec((None, S, E), lambda b, qi: (b, 0, 0))
    mask_spec = pl.BlockSpec((tq, S), lambda b, qi: (qi, 0))
    gamma_spec = pl.BlockSpec(memory_space=pltpu.MemorySpace.SMEM)

    out_shape = jax.ShapeDtypeStruct((B, S, E), out_dtype)
    out_specs = qo_spec
    if return_scores:
        out_shape = (out_shape, jax.ShapeDtypeStruct((B, H, S, S), scores_dtype))
        out_specs = (qo_spec,
                     pl.BlockSpec((None, H, tq, S), lambda b, qi: (b, 0, qi, 0)))

    itemsize = jnp.dtype(compute_dtype).itemsize
    bytes_accessed = (3 * B * S * E * itemsize + S * S
                      + B * S * E * jnp.dtype(out_dtype).itemsize)
    if return_scores:
        bytes_accessed += B * H * S * S * jnp.dtype(scores_dtype).itemsize
    cost = pl.CostEstimate(
        flops=4 * B * S * S * E,            # QK^T + attn@V over all heads
        transcendentals=4 * B * H * S * S,  # ~3 exps + 1 sqrt per (h, i, j)
        bytes_accessed=int(bytes_accessed))

    res = pl.pallas_call(
        functools.partial(attn_kernel, n_heads=H, maxout=maxout,
                          compute_dtype=compute_dtype,
                          return_scores=return_scores),
        grid=grid,
        in_specs=[gamma_spec, qo_spec, kv_spec, kv_spec, mask_spec],
        out_specs=out_specs,
        out_shape=out_shape,
        compiler_params=pltpu.CompilerParams(
            dimension_semantics=("parallel", "parallel"),
            vmem_limit_bytes=64 * 1024 * 1024),
        cost_estimate=cost,
    )(gammas, q, k, v, mask2d)

    if return_scores:
        return res
    return res, None


# ----------------------------------------------------------------------------
# Full module forward (kq_same=True, bias=True)
# ----------------------------------------------------------------------------
def mha_forward(params, q_in, k_in, v_in, mask, maxout=False,
                compute_dtype=jnp.bfloat16, return_scores=True):
    """mask is (1, 1, S, S) (or (S, S)), broadcast over batch/heads."""
    B, S, E = q_in.shape
    H = params["gammas"].shape[0]

    # Pre-transpose / pre-cast projection weights once (tiny E x E ops outside
    # the kernels).  kq_same=True -> q and k share the same weight/bias.
    wq = params["q_w"].T.astype(compute_dtype)
    wv = params["v_w"].T.astype(compute_dtype)
    wo = params["o_w"].T.astype(compute_dtype)
    bq, bv, bo = params["q_b"], params["v_b"], params["o_b"]

    proj_dtype = compute_dtype  # bf16 on the perf path: halves projection HBM/VMEM
    q2 = linear(q_in.reshape(B * S, E), wq, bq, out_dtype=proj_dtype).reshape(B, S, E)
    k2 = linear(k_in.reshape(B * S, E), wq, bq, out_dtype=proj_dtype).reshape(B, S, E)
    v2 = linear(v_in.reshape(B * S, E), wv, bv, out_dtype=proj_dtype).reshape(B, S, E)

    mask2d = (jnp.asarray(mask).reshape(S, S) != 0).astype(jnp.int8)
    gammas = params["gammas"].reshape(H).astype(jnp.float32)

    attn_out, scores = mha_attention(
        q2, k2, v2, mask2d, gammas, n_heads=H, maxout=maxout,
        compute_dtype=compute_dtype, return_scores=return_scores)

    out = linear(attn_out.reshape(B * S, E), wo, bo,
                 out_dtype=jnp.float32).reshape(B, S, E)
    return out, scores


# ----------------------------------------------------------------------------
# Pure-JAX reference (mirrors the PyTorch code) for validation
# ----------------------------------------------------------------------------
def attention_ref(q, k, v, mask, gamma, maxout=False):
    d_k = k.shape[-1]
    scores = jnp.einsum("bhqd,bhkd->bhqk", q, k) / math.sqrt(d_k)
    S = scores.shape[-1]
    x1 = jnp.broadcast_to(jnp.arange(S, dtype=jnp.float32)[None, :], (S, S))
    x2 = x1.T
    mask_b = mask != 0
    scores_ = jnp.where(mask_b, scores, -1e32)
    scores_ = jax.nn.softmax(scores_, axis=-1)
    distcum = jnp.cumsum(scores_, axis=-1)
    disttotal = jnp.sum(scores_, axis=-1, keepdims=True)
    position_effect = jnp.abs(x1 - x2)[None, None]
    dist_scores = jnp.sqrt(jnp.maximum((disttotal - distcum) * position_effect, 0.0))
    g = -jnp.abs(gamma)[None]
    total_effect = jnp.clip(jnp.exp(dist_scores * g), 1e-5, 1e5)
    scores = scores * total_effect
    scores = jnp.where(mask_b, scores, -1e32)
    scores = jax.nn.softmax(scores, axis=-1)
    scores = jnp.where(mask_b, scores, 0.0)
    if maxout:
        scale = jnp.minimum(1.0 / (jnp.max(scores, -1, keepdims=True) + 1e-8), 5.0)
        scores = scores * scale
    return jnp.einsum("bhqk,bhkd->bhqd", scores, v), scores


def mha_forward_ref(params, q_in, k_in, v_in, mask, maxout=False):
    B, S, E = q_in.shape
    H = params["gammas"].shape[0]
    D = E // H
    lin = lambda x, w, b: x @ w.T + b
    qh = lin(q_in, params["q_w"], params["q_b"]).reshape(B, S, H, D).transpose(0, 2, 1, 3)
    kh = lin(k_in, params["q_w"], params["q_b"]).reshape(B, S, H, D).transpose(0, 2, 1, 3)
    vh = lin(v_in, params["v_w"], params["v_b"]).reshape(B, S, H, D).transpose(0, 2, 1, 3)
    v_, scores = attention_ref(qh, kh, vh, mask, params["gammas"], maxout)
    concat = v_.transpose(0, 2, 1, 3).reshape(B, S, E)
    return lin(concat, params["o_w"], params["o_b"]), scores


# ----------------------------------------------------------------------------
if __name__ == "__main__":
    B, S, E, H = 2, 8, 32, 4  # batch, seq, embedding_size, n_heads

    key = jax.random.PRNGKey(0)
    ks = jax.random.split(key, 10)

    def xavier(k, shape):
        fan_out, fan_in = shape[0], shape[1]
        limit = math.sqrt(6.0 / (fan_in + fan_out))
        return jax.random.uniform(k, shape, jnp.float32, -limit, limit)

    params = {
        "q_w": xavier(ks[0], (E, E)),
        "q_b": jax.random.uniform(ks[1], (E,), jnp.float32, -0.1, 0.1),
        "v_w": xavier(ks[2], (E, E)),
        "v_b": jax.random.uniform(ks[3], (E,), jnp.float32, -0.1, 0.1),
        "o_w": xavier(ks[4], (E, E)),
        "o_b": jax.random.uniform(ks[5], (E,), jnp.float32, -0.1, 0.1),
        "gammas": jax.random.uniform(ks[6], (H, 1, 1), jnp.float32, -1.0, 1.0),
    }

    q_in = jax.random.normal(ks[7], (B, S, E), jnp.float32)
    k_in = jax.random.normal(ks[8], (B, S, E), jnp.float32)
    v_in = jax.random.normal(ks[9], (B, S, E), jnp.float32)
    mask = jnp.tril(jnp.ones((S, S), jnp.float32))[None, None, :, :]

    # References
    out_ref, scores_ref = mha_forward_ref(params, q_in, k_in, v_in, mask, maxout=False)
    out_mx_ref, scores_mx_ref = mha_forward_ref(params, q_in, k_in, v_in, mask, maxout=True)

    # 1) f32-operand path: validates kernel logic at tight tolerance.
    out32, sc32 = mha_forward(params, q_in, k_in, v_in, mask,
                              maxout=False, compute_dtype=jnp.float32)
    jax.block_until_ready(out32)
    assert jnp.allclose(out32, out_ref, rtol=1e-4, atol=1e-4), "f32 output mismatch"
    assert jnp.allclose(sc32, scores_ref, rtol=1e-4, atol=1e-4), "f32 scores mismatch"

    # 1b) maxout branch
    out_mx, sc_mx = mha_forward(params, q_in, k_in, v_in, mask,
                                maxout=True, compute_dtype=jnp.float32)
    jax.block_until_ready(out_mx)
    assert jnp.allclose(out_mx, out_mx_ref, rtol=1e-4, atol=1e-4), "maxout output mismatch"
    assert jnp.allclose(sc_mx, scores_mx_ref, rtol=1e-4, atol=1e-4), "maxout scores mismatch"

    # 1c) scores-output disabled (drops the dominant HBM write stream)
    out_ns, sc_ns = mha_forward(params, q_in, k_in, v_in, mask,
                                maxout=False, compute_dtype=jnp.float32,
                                return_scores=False)
    jax.block_until_ready(out_ns)
    assert sc_ns is None
    assert jnp.allclose(out_ns, out_ref, rtol=1e-4, atol=1e-4), "no-scores output mismatch"

    # 2) Performance path: bf16 MXU operands + bf16 intermediate/score streams,
    #    f32 accumulation / softmax / decay math.
    out_bf, sc_bf = mha_forward(params, q_in, k_in, v_in, mask, maxout=False)
    out_bf = jax.block_until_ready(out_bf)
    sc_bf = jax.block_until_ready(sc_bf)
    assert jnp.allclose(out_bf, out_ref, rtol=2e-1, atol=2e-1), "bf16 output sanity failed"
    assert jnp.allclose(sc_bf.astype(jnp.float32), scores_ref,
                        rtol=2e-1, atol=2e-1), "bf16 scores sanity failed"

    print("KERNEL_OK")
</pallas_src>

<mosaic_0001>
module attributes {stable_mosaic.version = 11 : i64} {
  func.func @linear_kernel(%arg0: i32, %arg1: memref<16x32xf32, #tpu.memory_space<vmem>>, %arg2: memref<32x32xf32, #tpu.memory_space<vmem>>, %arg3: memref<1x32xf32, #tpu.memory_space<vmem>>, %arg4: memref<16x32xf32, #tpu.memory_space<vmem>>) attributes {dimension_semantics = [#tpu.dimension_semantics<parallel>], iteration_bounds = array<i64: 1>, scalar_prefetch = 0 : i64, scratch_operands = 0 : i64, tpu.core_type = #tpu.core_type<tc>, window_params = [{transform_indices = @transform_0, window_bounds = array<i64: 16, 32>}, {pipeline_mode = #tpu.pipeline_mode<synchronous>, transform_indices = @transform_1, window_bounds = array<i64: 32, 32>}, {pipeline_mode = #tpu.pipeline_mode<synchronous>, transform_indices = @transform_2, window_bounds = array<i64: 1, 32>}, {transform_indices = @transform_3, window_bounds = array<i64: 16, 32>}]} {
    %c0 = arith.constant 0 : index
    %c0_0 = arith.constant 0 : index
    %0 = vector.load %arg1[%c0, %c0_0] : memref<16x32xf32, #tpu.memory_space<vmem>>, vector<16x32xf32>
    %c0_1 = arith.constant 0 : index
    %c0_2 = arith.constant 0 : index
    %1 = vector.load %arg2[%c0_1, %c0_2] : memref<32x32xf32, #tpu.memory_space<vmem>>, vector<32x32xf32>
    %cst = arith.constant dense<0.000000e+00> : vector<16x32xf32>
    %2 = tpu.matmul %0, %1, %cst {dimension_numbers = #tpu.dot_dimension_numbers<[1], [0], [0], [1], [0, 0, 1, 1], [], []>} : vector<16x32xf32>, vector<32x32xf32>, vector<16x32xf32> -> vector<16x32xf32>
    %c0_3 = arith.constant 0 : index
    %c0_4 = arith.constant 0 : index
    %3 = vector.load %arg3[%c0_3, %c0_4] : memref<1x32xf32, #tpu.memory_space<vmem>>, vector<1x32xf32>
    %4 = vector.broadcast %3 : vector<1x32xf32> to vector<16x32xf32>
    %5 = arith.addf %2, %4 : vector<16x32xf32>
    %c0_5 = arith.constant 0 : index
    %c0_6 = arith.constant 0 : index
    %6 = vector.load %arg4[%c0_5, %c0_6] : memref<16x32xf32, #tpu.memory_space<vmem>>, vector<16x32xf32>
    tpu.vector_store %arg4[%c0_5, %c0_6], %5 {strides = array<i32>} : memref<16x32xf32, #tpu.memory_space<vmem>>, vector<16x32xf32>,
    return
  }
  func.func @transform_0(%arg0: i32) -> (i32, i32) {
    %c0_i32 = arith.constant 0 : i32
    %c0_i32_0 = arith.constant 0 : i32
    return %arg0, %c0_i32 : i32, i32
  }
  func.func @transform_1(%arg0: i32) -> (i32, i32) {
    %c0_i32 = arith.constant 0 : i32
    %c0_i32_0 = arith.constant 0 : i32
    %c0_i32_1 = arith.constant 0 : i32
    return %c0_i32, %c0_i32_0 : i32, i32
  }
  func.func @transform_2(%arg0: i32) -> (i32, i32) {
    %c0_i32 = arith.constant 0 : i32
    %c0_i32_0 = arith.constant 0 : i32
    %c0_i32_1 = arith.constant 0 : i32
    return %c0_i32, %c0_i32_0 : i32, i32
  }
  func.func @transform_3(%arg0: i32) -> (i32, i32) {
    %c0_i32 = arith.constant 0 : i32
    %c0_i32_0 = arith.constant 0 : i32
    return %arg0, %c0_i32 : i32, i32
  }
}

</mosaic_0001>

<llo_original>
// kernel: tpu_custom_call.1
$region0: #{tpu_custom_call.1}
  #allocation0 [shape = 'u32[]', space=smem, size = 0x4, offset = 0x4, fixed_abs, tag = 'smem constant byte address 0x4 - core index']
  #allocation1 [shape = 'u32[144,128]{1,0:T(1,128)}', space=vmem, size = 0x12000, scoped, tag = 'internal scratch']
  %s0 = inlined_call_operand.hbm [shape: f32[16,32], index: 0, kind: input, shape index: {}]
  %s1 = inlined_call_operand.hbm [shape: f32[32,32], index: 1, kind: input, shape index: {}]
  %s2 = inlined_call_operand.vmem [shape: f32[1,32], index: 2, kind: input, shape index: {}]
  %s3 = inlined_call_operand.hbm [shape: f32[16,32], index: 3, kind: output, shape index: {}]
  %s4 = sld [smem:[#allocation0]]
  $region30: #{tpu_custom_call.1} parent=0
    _
  %s6 = ssub.s32 1, %s4
  %s7 = scalar_select 0, %s6, %s4
  $region1: #{tpu_custom_call.1} parent=0
    #allocation2 [shape = 'u8[8192]{0}', space=vmem, size = 0x2000, scoped, tag = 'input window, operand 0, single buffered']
    #allocation3 [shape = 's32[1]{0}', space=sflag, size = 0x4, scoped, tag = 'scoped memory for tpu_custom_call.1']
    #allocation4 [shape = 's32[1]{0}', space=sflag, size = 0x4, scoped, tag = 'scoped memory for tpu_custom_call.1']
    #allocation5 [shape = 'u8[16384]{0}', space=vmem, size = 0x4000, scoped, tag = 'input window, operand 1, single buffered']
    #allocation6 [shape = 's32[1]{0}', space=sflag, size = 0x4, scoped, tag = 'scoped memory for tpu_custom_call.1']
    #allocation7 [shape = 'u8[8192]{0}', space=vmem, size = 0x2000, scoped, tag = 'output window, operand 0, single buffered']
    %8 = vsyncpa [#allocation3], 0
    %9 = vsyncpa [#allocation6], 0
    %10 = vsyncpa [#allocation4], 0
    // Predicated region
    $region2: #{tpu_custom_call.1} parent=1 // pred_check
      _
    $region3: #{tpu_custom_call.1} parent=1 // pred_check_branch
      %12 = sbr.rel (0) target = $region5
    $region4: #{tpu_custom_call.1} parent=1 // pred_region
      %s14 = ssub.s32 256, 256
      %15 = vsyncadd [#allocation3], %s14
      %s16 = sshll.u32 [#allocation2], 4
      %s17 = int_to_ptr.vmem [resolvable:$true] %s16
      %22 = dma.hbm_to_vmem [thread:$0]  %s0, 256, %s17, [#allocation3], 128, 128, 8
    $region5: #{tpu_custom_call.1} parent=1 // pred_fallthru
      _
    // Predicated region
    $region6: #{tpu_custom_call.1} parent=1 // pred_check
      _
    $region7: #{tpu_custom_call.1} parent=1 // pred_check_branch
      %24 = sbr.rel (0) target = $region9
    $region8: #{tpu_custom_call.1} parent=1 // pred_region
      %s26 = ssub.s32 512, 512
      %27 = vsyncadd [#allocation6], %s26
      %s28 = sshll.u32 [#allocation5], 4
      %s29 = int_to_ptr.vmem [resolvable:$true] %s28
      %34 = dma.hbm_to_vmem [thread:$0]  %s1, 512, %s29, [#allocation6], 128, 128, 8
    $region9: #{tpu_custom_call.1} parent=1 // pred_fallthru
      _
    // Predicated region
    $region10: #{tpu_custom_call.1} parent=1 // pred_check
      _
    $region11: #{tpu_custom_call.1} parent=1 // pred_check_branch
      %36 = sbr.rel (0) target = $region13
    $region12: #{tpu_custom_call.1} parent=1 // pred_region
      _
    $region13: #{tpu_custom_call.1} parent=1 // pred_fallthru
      _
    // Predicated region
    $region14: #{tpu_custom_call.1} parent=1 // pred_check
      _
    $region15: #{tpu_custom_call.1} parent=1 // pred_check_branch
      %38 = sbr.rel (0) target = $region17
    $region16: #{tpu_custom_call.1} parent=1 // pred_region
      %39 = dma.done [#allocation3], 256
    $region17: #{tpu_custom_call.1} parent=1 // pred_fallthru
      _
    // Predicated region
    $region18: #{tpu_custom_call.1} parent=1 // pred_check
      _
    $region19: #{tpu_custom_call.1} parent=1 // pred_check_branch
      %41 = sbr.rel (0) target = $region21
    $region20: #{tpu_custom_call.1} parent=1 // pred_region
      %42 = dma.done [#allocation6], 512
    $region21: #{tpu_custom_call.1} parent=1 // pred_fallthru
      _
    %v43 = vld [vmem:[#allocation2] sm:$0xff]
    %v44 = vld [vmem:[#allocation2 + $0x8] sm:$0xff]
    %v45 = vld [vmem:[#allocation5] sm:$0xff]
    %v46 = vld [vmem:[#allocation5 + $0x8] sm:$0xff]
    %v47 = vld [vmem:[#allocation5 + $0x10] sm:$0xff]
    %v48 = vld [vmem:[#allocation5 + $0x18] sm:$0xff]
    %v49 = vld [vmem:[%s2] sm:$0x1]
    %v51 = vlaneseq
    %v52 = vshrl.u32 %v51, 7
    %v53 = vsub.s32 0, %v52
    %v54 = vrot.slane %v49, %v53
    %vm56 = vcmask 261120
    %v58 = vsel %vm56, %v43, 0
    %v61 = vsel %vm56, %v44, 0
    %63 = vmatprep.subr.mxu0 0.0
    %64 = vmatpush1.msra.mxu0 %v45
    %65 = vmatprep.subr.mxu0 0.0
    %66 = vmatpush1.msra.mxu0 %v46
    %67 = vmatprep.subr.mxu0 0.0
    %68 = vmatpush1.msra.mxu0 %v47
    %69 = vmatprep.subr.mxu0 0.0
    %70 = vmatpush1.msra.mxu0 %v48
    %71 = vmatprep.subr.mxu0 0.0
    %72 = vmatpush1.msra.mxu0 0.0
    %73 = vmatprep.subr.mxu0 0.0
    %74 = vmatpush1.msra.mxu0 0.0
    %75 = vmatprep.subr.mxu0 0.0
    %76 = vmatpush1.msra.mxu0 0.0
    %77 = vmatprep.subr.mxu0 0.0
    %78 = vmatpush1.msra.mxu0 0.0
    %79 = vmatprep.subr.mxu0 0.0
    %80 = vmatpush1.msra.mxu0 0.0
    %81 = vmatprep.subr.mxu0 0.0
    %82 = vmatpush1.msra.mxu0 0.0
    %83 = vmatprep.subr.mxu0 0.0
    %84 = vmatpush1.msra.mxu0 0.0
    %85 = vmatprep.subr.mxu0 0.0
    %86 = vmatpush1.msra.mxu0 0.0
    %87 = vmatprep.subr.mxu0 0.0
    %88 = vmatpush1.msra.mxu0 0.0
    %89 = vmatprep.subr.mxu0 0.0
    %90 = vmatpush1.msra.mxu0 0.0
    %91 = vmatprep.subr.mxu0 0.0
    %92 = vmatpush1.msra.mxu0 0.0
    %93 = vmatprep.subr.mxu0 0.0
    %94 = vmatpush1.msra.mxu0 0.0
    %95 = vmatprep.subr.mxu0 0.0
    %96 = vmatpush1.msra.mxu0 0.0
    %97 = vmatprep.subr.mxu0 0.0
    %98 = vmatpush1.msra.mxu0 0.0
    %99 = vmatprep.subr.mxu0 0.0
    %100 = vmatpush1.msra.mxu0 0.0
    %101 = vmatprep.subr.mxu0 0.0
    %102 = vmatpush1.msra.mxu0 0.0
    %103 = vmatprep.subr.mxu0 0.0
    %104 = vmatpush1.msra.mxu0 0.0
    %105 = vmatprep.subr.mxu0 0.0
    %106 = vmatpush1.msra.mxu0 0.0
    %107 = vmatprep.subr.mxu0 0.0
    %108 = vmatpush1.msra.mxu0 0.0
    %109 = vmatprep.subr.mxu0 0.0
    %110 = vmatpush1.msra.mxu0 0.0
    %111 = vmatprep.subr.mxu0 0.0
    %112 = vmatpush1.msra.mxu0 0.0
    %113 = vmatprep.subr.mxu0 0.0
    %114 = vmatpush1.msra.mxu0 0.0
    %115 = vmatprep.subr.mxu0 0.0
    %116 = vmatpush1.msra.mxu0 0.0
    %117 = vmatprep.subr.mxu0 0.0
    %118 = vmatpush1.msra.mxu0 0.0
    %119 = vmatprep.subr.mxu0 0.0
    %120 = vmatpush1.msra.mxu0 0.0
    %121 = vmatprep.subr.mxu0 0.0
    %122 = vmatpush1.msra.mxu0 0.0
    %123 = vmatprep.subr.mxu0 0.0
    %124 = vmatpush1.msra.mxu0 0.0
    %125 = vmatprep.subr.mxu0 0.0
    %126 = vmatpush1.msra.mxu0 0.0
    %127 = vmatprep.mubr.f32.mxu0 0.0
    %128 = vmatmul.mubr.f32.gmra.mrb[0].mxu0 %v58
    %v129 = vpop.f32.mrb[0].mxu0
    %v130 = vadd.f32 %v54, %v129
    %v131 = vpop.f32.mrb[0].mxu0
    %132 = vmatprep.mubr.f32.mxu0 0.0
    %133 = vmatmul.mubr.f32.gmra.mrb[0].mxu0 %v61
    %v134 = vpop.f32.mrb[0].mxu0
    %v135 = vadd.f32 %v54, %v134
    %v136 = vpop.f32.mrb[0].mxu0
    %137 = vdwg.mxu0
    %138 = vst.msk [vmem:[#allocation7] sm:$0xff] %vm56, %v130
    %139 = vst.msk [vmem:[#allocation7 + $0x8] sm:$0xff] %vm56, %v135
    // Predicated region
    $region22: #{tpu_custom_call.1} parent=1 // pred_check
      _
    $region23: #{tpu_custom_call.1} parent=1 // pred_check_branch
      %141 = sbr.rel (0) target = $region25
    $region24: #{tpu_custom_call.1} parent=1 // pred_region
      %s143 = ssub.s32 256, 256
      %144 = vsyncadd [#allocation4], %s143
      %s145 = sshll.u32 [#allocation7], 4
      %s146 = int_to_ptr.vmem [resolvable:$true] %s145
      %151 = dma.vmem_to_hbm [thread:$0]  %s146, 256, %s3, [#allocation4], 128, 128, 8
    $region25: #{tpu_custom_call.1} parent=1 // pred_fallthru
      _
    // Predicated region
    $region26: #{tpu_custom_call.1} parent=1 // pred_check
      _
    $region27: #{tpu_custom_call.1} parent=1 // pred_check_branch
      %153 = sbr.rel (0) target = $region29
    $region28: #{tpu_custom_call.1} parent=1 // pred_region
      %154 = dma.done [#allocation4], 256
    $region29: #{tpu_custom_call.1} parent=1 // pred_fallthru
      _
    %155 = vsyncpa [#allocation3], 1
    %156 = vsyncpa [#allocation6], 1
    %157 = vsyncpa [#allocation4], 1

</llo_original>
